<compile_context>
chip_gen: v7x
topology: tpu7x:2x2x1
jax: 0.10.0
libtpu: 0.0.40
codegen_flags: <defaults>
</compile_context>

<pallas_src>
import functools

import jax
import jax.numpy as jnp
from jax.experimental import pallas as pl
from jax.experimental.pallas import tpu as pltpu


def _gdconv_bn_kernel(x_ref, w_ref, gamma_ref, beta_ref, o_ref, xflat_ref,
                      *, N, C, H, W, K, pad, eps):
    # x_ref    : (N*C, H*W)      one flat row per (n, c) image plane
    # w_ref    : (K*K, N*C, 1)   per-tap filter value for every (n, c) row
    # gamma_ref: (N*C, 1)        BN affine scale, repeated per batch element
    # beta_ref : (N*C, 1)        BN affine shift
    # o_ref    : (N*C, H*W)
    # xflat_ref: (N*C, (H + 2*pad + 2) * W) VMEM scratch, zero-padded rows
    NC, HW = N * C, H * W
    SH = W                                      # extra zero margin at the left

    # ---- zero-pad inside the kernel (no jnp.pad / transpose in the wrapper) --
    xflat_ref[...] = jnp.zeros_like(xflat_ref)
    x0 = SH + pad * W                           # flat offset of x row (h=0,w=0)
    xflat_ref[:, x0:x0 + HW] = x_ref[...].astype(jnp.float32)

    # w-coordinate of every flattened output position (for the column borders)
    wpos = jax.lax.broadcasted_iota(jnp.int32, (NC, HW), 1) % W

    # ---- depthwise conv: K*K constant-offset taps on the flat padded row ----
    acc = jnp.zeros((NC, HW), jnp.float32)
    for v in range(K):                          # static taps -> fully unrolled
        dv = v - pad
        part = jnp.zeros((NC, HW), jnp.float32)
        for u in range(K):
            s = SH + u * W + dv                 # static slice start, >= 0
            tap = xflat_ref[:, s:s + HW]        # (NC, HW)
            part = part + tap * w_ref[u * K + v, :, :].astype(jnp.float32)
        if dv < 0:                              # left border columns are pad
            part = jnp.where(wpos >= -dv, part, 0.0)
        elif dv > 0:                            # right border columns are pad
            part = jnp.where(wpos < W - dv, part, 0.0)
        acc = acc + part

    # ---- fused train-mode BatchNorm2d (biased per-channel batch stats) ------
    inv_count = 1.0 / float(N * HW)
    row_sum = jnp.sum(acc, axis=1, keepdims=True)            # (NC, 1)
    ch_sum = row_sum
    for n in range(1, N):                       # sum the N batch replicas of
        ch_sum = ch_sum + pltpu.roll(row_sum, shift=n * C, axis=0)  # each chan
    mean = ch_sum * inv_count                                # (NC, 1)
    centered = acc - mean
    row_ss = jnp.sum(centered * centered, axis=1, keepdims=True)
    ch_ss = row_ss
    for n in range(1, N):
        ch_ss = ch_ss + pltpu.roll(row_ss, shift=n * C, axis=0)
    inv_std = jax.lax.rsqrt(ch_ss * inv_count + eps)         # (NC, 1)
    out = centered * (inv_std * gamma_ref[...].astype(jnp.float32)) \
          + beta_ref[...].astype(jnp.float32)
    o_ref[...] = out.astype(o_ref.dtype)


def gdconv_forward(x_nchw, w_oihw, gamma, beta, *, padding, eps=1e-5):
    """x_nchw: (N, C, H, W); w_oihw: (C, 1, K, K) PyTorch depthwise layout."""
    N, C, H, W = x_nchw.shape
    K = w_oihw.shape[-1]
    # Flat-row tap trick requires a stride-1 'same' conv (output HxW == input).
    assert K == 2 * padding + 1, "this kernel assumes 'same' depthwise conv"
    # TODO(synk): general (non-'same') padding / stride needs a 2-D tile layout.
    NC, HW = N * C, H * W
    Lflat = (H + 2 * padding + 2) * W           # zero margins on both ends

    # Free metadata reshapes only — no transposes, no jnp.pad in HLO.
    x_flat = x_nchw.reshape(NC, HW)
    # Per-tap, per-(n,c)-row filter values: (K*K, NC, 1).  Tiny (C*K*K floats).
    w_tap = jnp.transpose(w_oihw[:, 0, :, :].reshape(C, K * K), (1, 0))
    w_tap = jnp.tile(w_tap, (1, N)).reshape(K * K, NC, 1)
    gamma_rows = jnp.tile(gamma, (N,)).reshape(NC, 1)
    beta_rows = jnp.tile(beta, (N,)).reshape(NC, 1)

    # Whole problem (~10 KB) resident in VMEM -> grid=(1,).  At production
    # sizes, split a leading 'parallel' axis (v7x 2nd TensorCore) and tile the
    # BN reduction; unnecessary (pure overhead) at this toy shape.
    out_flat = pl.pallas_call(
        functools.partial(_gdconv_bn_kernel, N=N, C=C, H=H, W=W, K=K,
                          pad=padding, eps=eps),
        out_shape=jax.ShapeDtypeStruct((NC, HW), x_nchw.dtype),
        grid=(1,),
        in_specs=[
            pl.BlockSpec((NC, HW), lambda i: (0, 0)),
            pl.BlockSpec((K * K, NC, 1), lambda i: (0, 0, 0)),
            pl.BlockSpec((NC, 1), lambda i: (0, 0)),
            pl.BlockSpec((NC, 1), lambda i: (0, 0)),
        ],
        out_specs=pl.BlockSpec((NC, HW), lambda i: (0, 0)),
        scratch_shapes=[pltpu.VMEM((NC, Lflat), jnp.float32)],
        compiler_params=pltpu.CompilerParams(
            dimension_semantics=("arbitrary",)),
    )(x_flat, w_tap, gamma_rows, beta_rows)

    return out_flat.reshape(N, C, H, W)         # free reshape back to NCHW


def _reference(x, w, gamma, beta, padding, eps=1e-5):
    y = jax.lax.conv_general_dilated(
        x, w, window_strides=(1, 1),
        padding=[(padding, padding), (padding, padding)],
        dimension_numbers=("NCHW", "OIHW", "NCHW"),
        feature_group_count=x.shape[1])
    mean = jnp.mean(y, axis=(0, 2, 3), keepdims=True)
    var = jnp.mean((y - mean) ** 2, axis=(0, 2, 3), keepdims=True)
    g = gamma.reshape(1, -1, 1, 1)
    b = beta.reshape(1, -1, 1, 1)
    return (y - mean) * jax.lax.rsqrt(var + eps) * g + b


if __name__ == "__main__":
    # GDConv(in_planes=4, out_planes=4, kernel_size=3, padding=1, bias=False)
    N, C, H, W = 2, 4, 16, 16
    K, padding = 3, 1

    key = jax.random.PRNGKey(0)
    k1, k2, k3, k4 = jax.random.split(key, 4)

    x = jax.random.normal(k1, (N, C, H, W), jnp.float32)
    # Deterministic synthetic init for the depthwise Conv2d weight (C, 1, K, K).
    bound = 1.0 / (K * K) ** 0.5
    w = jax.random.uniform(k2, (C, 1, K, K), jnp.float32, -bound, bound)
    # BatchNorm affine params (nontrivial deterministic values).
    gamma = jax.random.uniform(k3, (C,), jnp.float32, 0.5, 1.5)
    beta = 0.1 * jax.random.normal(k4, (C,), jnp.float32)

    out = gdconv_forward(x, w, gamma, beta, padding=padding)
    out = jax.block_until_ready(out)

    ref = _reference(x, w, gamma, beta, padding)
    assert out.shape == (N, C, H, W)
    assert jnp.allclose(out, ref, atol=1e-4, rtol=1e-4), \
        float(jnp.max(jnp.abs(out - ref)))
    print("KERNEL_OK")
</pallas_src>

<mosaic_0001>
module attributes {stable_mosaic.version = 11 : i64} {
  func.func @_gdconv_bn_kernel(%arg0: i32, %arg1: memref<8x256xf32, #tpu.memory_space<vmem>>, %arg2: memref<9x8x1xf32, #tpu.memory_space<vmem>>, %arg3: memref<8x1xf32, #tpu.memory_space<vmem>>, %arg4: memref<8x1xf32, #tpu.memory_space<vmem>>, %arg5: memref<8x256xf32, #tpu.memory_space<vmem>>, %arg6: memref<8x320xf32, #tpu.memory_space<vmem>>) attributes {dimension_semantics = [#tpu.dimension_semantics<arbitrary>], iteration_bounds = array<i64: 1>, scalar_prefetch = 0 : i64, scratch_operands = 1 : i64, tpu.core_type = #tpu.core_type<tc>, window_params = [{pipeline_mode = #tpu.pipeline_mode<synchronous>, transform_indices = @transform_0, window_bounds = array<i64: 8, 256>}, {pipeline_mode = #tpu.pipeline_mode<synchronous>, transform_indices = @transform_1, window_bounds = array<i64: 9, 8, 1>}, {pipeline_mode = #tpu.pipeline_mode<synchronous>, transform_indices = @transform_2, window_bounds = array<i64: 8, 1>}, {pipeline_mode = #tpu.pipeline_mode<synchronous>, transform_indices = @transform_3, window_bounds = array<i64: 8, 1>}, {pipeline_mode = #tpu.pipeline_mode<synchronous>, transform_indices = @transform_4, window_bounds = array<i64: 8, 256>}]} {
    %cst = arith.constant 0.000000e+00 : f32
    %0 = vector.broadcast %cst : f32 to vector<8x320xf32>
    %c0 = arith.constant 0 : index
    %c0_0 = arith.constant 0 : index
    %1 = vector.load %arg6[%c0, %c0_0] : memref<8x320xf32, #tpu.memory_space<vmem>>, vector<8x320xf32>
    tpu.vector_store %arg6[%c0, %c0_0], %0 {strides = array<i32>} : memref<8x320xf32, #tpu.memory_space<vmem>>, vector<8x320xf32>,
    %c0_1 = arith.constant 0 : index
    %c0_2 = arith.constant 0 : index
    %2 = vector.load %arg1[%c0_1, %c0_2] : memref<8x256xf32, #tpu.memory_space<vmem>>, vector<8x256xf32>
    %c0_3 = arith.constant 0 : index
    %c32 = arith.constant 32 : index
    %3 = vector.load %arg6[%c0_3, %c32] : memref<8x320xf32, #tpu.memory_space<vmem>>, vector<8x256xf32>
    tpu.vector_store %arg6[%c0_3, %c32], %2 {strides = array<i32>} : memref<8x320xf32, #tpu.memory_space<vmem>>, vector<8x256xf32>,
    %4 = tpu.iota {dimensions = array<i32: 1>} : vector<8x256xi32>
    %c16_i32 = arith.constant 16 : i32
    %c0_i32 = arith.constant 0 : i32
    %5 = arith.cmpi eq, %c16_i32, %c0_i32 : i32
    %c1_i32 = arith.constant 1 : i32
    %6 = arith.select %5, %c1_i32, %c16_i32 : i32
    %7 = vector.broadcast %6 : i32 to vector<8x256xi32>
    %8 = arith.remsi %4, %7 : vector<8x256xi32>
    %c0_i32_4 = arith.constant 0 : i32
    %9 = vector.broadcast %c0_i32_4 : i32 to vector<8x256xi32>
    %10 = arith.cmpi ne, %8, %9 : vector<8x256xi32>
    %c0_i32_5 = arith.constant 0 : i32
    %11 = vector.broadcast %c0_i32_5 : i32 to vector<8x256xi32>
    %12 = arith.cmpi slt, %8, %11 : vector<8x256xi32>
    %c0_i32_6 = arith.constant 0 : i32
    %13 = arith.cmpi slt, %6, %c0_i32_6 : i32
    %14 = vector.broadcast %13 : i1 to vector<8x256xi1>
    %15 = vector.broadcast %14 : vector<8x256xi1> to vector<8x256xi1>
    %16 = arith.xori %12, %15 : vector<8x256xi1>
    %17 = arith.andi %16, %10 : vector<8x256xi1>
    %18 = vector.broadcast %6 : i32 to vector<8x256xi32>
    %19 = arith.addi %8, %18 : vector<8x256xi32>
    %20 = arith.select %17, %19, %8 : vector<8x256xi1>, vector<8x256xi32>
    %cst_7 = arith.constant 0.000000e+00 : f32
    %21 = vector.broadcast %cst_7 : f32 to vector<8x256xf32>
    %cst_8 = arith.constant 0.000000e+00 : f32
    %22 = vector.broadcast %cst_8 : f32 to vector<8x256xf32>
    %c0_9 = arith.constant 0 : index
    %c15 = arith.constant 15 : index
    %23 = vector.load %arg6[%c0_9, %c15] : memref<8x320xf32, #tpu.memory_space<vmem>>, vector<8x256xf32>
    %c0_10 = arith.constant 0 : index
    %c0_11 = arith.constant 0 : index
    %c0_12 = arith.constant 0 : index
    %24 = vector.load %arg2[%c0_10, %c0_11, %c0_12] : memref<9x8x1xf32, #tpu.memory_space<vmem>>, vector<1x8x1xf32>
    %25 = vector.shape_cast %24 : vector<1x8x1xf32> to vector<8x1xf32>
    %26 = vector.broadcast %25 : vector<8x1xf32> to vector<8x256xf32>
    %27 = arith.mulf %23, %26 : vector<8x256xf32>
    %28 = arith.addf %22, %27 : vector<8x256xf32>
    %c0_13 = arith.constant 0 : index
    %c31 = arith.constant 31 : index
    %29 = vector.load %arg6[%c0_13, %c31] : memref<8x320xf32, #tpu.memory_space<vmem>>, vector<8x256xf32>
    %c3 = arith.constant 3 : index
    %c0_14 = arith.constant 0 : index
    %c0_15 = arith.constant 0 : index
    %30 = vector.load %arg2[%c3, %c0_14, %c0_15] : memref<9x8x1xf32, #tpu.memory_space<vmem>>, vector<1x8x1xf32>
    %31 = vector.shape_cast %30 : vector<1x8x1xf32> to vector<8x1xf32>
    %32 = vector.broadcast %31 : vector<8x1xf32> to vector<8x256xf32>
    %33 = arith.mulf %29, %32 : vector<8x256xf32>
    %34 = arith.addf %28, %33 : vector<8x256xf32>
    %c0_16 = arith.constant 0 : index
    %c47 = arith.constant 47 : index
    %35 = vector.load %arg6[%c0_16, %c47] : memref<8x320xf32, #tpu.memory_space<vmem>>, vector<8x256xf32>
    %c6 = arith.constant 6 : index
    %c0_17 = arith.constant 0 : index
    %c0_18 = arith.constant 0 : index
    %36 = vector.load %arg2[%c6, %c0_17, %c0_18] : memref<9x8x1xf32, #tpu.memory_space<vmem>>, vector<1x8x1xf32>
    %37 = vector.shape_cast %36 : vector<1x8x1xf32> to vector<8x1xf32>
    %38 = vector.broadcast %37 : vector<8x1xf32> to vector<8x256xf32>
    %39 = arith.mulf %35, %38 : vector<8x256xf32>
    %40 = arith.addf %34, %39 : vector<8x256xf32>
    %c1_i32_19 = arith.constant 1 : i32
    %41 = vector.broadcast %c1_i32_19 : i32 to vector<8x256xi32>
    %42 = arith.cmpi sge, %20, %41 : vector<8x256xi32>
    %cst_20 = arith.constant 0.000000e+00 : f32
    %43 = vector.broadcast %cst_20 : f32 to vector<8x256xf32>
    %44 = arith.select %42, %40, %43 : vector<8x256xi1>, vector<8x256xf32>
    %45 = arith.addf %21, %44 : vector<8x256xf32>
    %cst_21 = arith.constant 0.000000e+00 : f32
    %46 = vector.broadcast %cst_21 : f32 to vector<8x256xf32>
    %c0_22 = arith.constant 0 : index
    %c16 = arith.constant 16 : index
    %47 = vector.load %arg6[%c0_22, %c16] : memref<8x320xf32, #tpu.memory_space<vmem>>, vector<8x256xf32>
    %c1 = arith.constant 1 : index
    %c0_23 = arith.constant 0 : index
    %c0_24 = arith.constant 0 : index
    %48 = vector.load %arg2[%c1, %c0_23, %c0_24] : memref<9x8x1xf32, #tpu.memory_space<vmem>>, vector<1x8x1xf32>
    %49 = vector.shape_cast %48 : vector<1x8x1xf32> to vector<8x1xf32>
    %50 = vector.broadcast %49 : vector<8x1xf32> to vector<8x256xf32>
    %51 = arith.mulf %47, %50 : vector<8x256xf32>
    %52 = arith.addf %46, %51 : vector<8x256xf32>
    %c0_25 = arith.constant 0 : index
    %c32_26 = arith.constant 32 : index
    %53 = vector.load %arg6[%c0_25, %c32_26] : memref<8x320xf32, #tpu.memory_space<vmem>>, vector<8x256xf32>
    %c4 = arith.constant 4 : index
    %c0_27 = arith.constant 0 : index
    %c0_28 = arith.constant 0 : index
    %54 = vector.load %arg2[%c4, %c0_27, %c0_28] : memref<9x8x1xf32, #tpu.memory_space<vmem>>, vector<1x8x1xf32>
    %55 = vector.shape_cast %54 : vector<1x8x1xf32> to vector<8x1xf32>
    %56 = vector.broadcast %55 : vector<8x1xf32> to vector<8x256xf32>
    %57 = arith.mulf %53, %56 : vector<8x256xf32>
    %58 = arith.addf %52, %57 : vector<8x256xf32>
    %c0_29 = arith.constant 0 : index
    %c48 = arith.constant 48 : index
    %59 = vector.load %arg6[%c0_29, %c48] : memref<8x320xf32, #tpu.memory_space<vmem>>, vector<8x256xf32>
    %c7 = arith.constant 7 : index
    %c0_30 = arith.constant 0 : index
    %c0_31 = arith.constant 0 : index
    %60 = vector.load %arg2[%c7, %c0_30, %c0_31] : memref<9x8x1xf32, #tpu.memory_space<vmem>>, vector<1x8x1xf32>
    %61 = vector.shape_cast %60 : vector<1x8x1xf32> to vector<8x1xf32>
    %62 = vector.broadcast %61 : vector<8x1xf32> to vector<8x256xf32>
    %63 = arith.mulf %59, %62 : vector<8x256xf32>
    %64 = arith.addf %58, %63 : vector<8x256xf32>
    %65 = arith.addf %45, %64 : vector<8x256xf32>
    %cst_32 = arith.constant 0.000000e+00 : f32
    %66 = vector.broadcast %cst_32 : f32 to vector<8x256xf32>
    %c0_33 = arith.constant 0 : index
    %c17 = arith.constant 17 : index
    %67 = vector.load %arg6[%c0_33, %c17] : memref<8x320xf32, #tpu.memory_space<vmem>>, vector<8x256xf32>
    %c2 = arith.constant 2 : index
    %c0_34 = arith.constant 0 : index
    %c0_35 = arith.constant 0 : index
    %68 = vector.load %arg2[%c2, %c0_34, %c0_35] : memref<9x8x1xf32, #tpu.memory_space<vmem>>, vector<1x8x1xf32>
    %69 = vector.shape_cast %68 : vector<1x8x1xf32> to vector<8x1xf32>
    %70 = vector.broadcast %69 : vector<8x1xf32> to vector<8x256xf32>
    %71 = arith.mulf %67, %70 : vector<8x256xf32>
    %72 = arith.addf %66, %71 : vector<8x256xf32>
    %c0_36 = arith.constant 0 : index
    %c33 = arith.constant 33 : index
    %73 = vector.load %arg6[%c0_36, %c33] : memref<8x320xf32, #tpu.memory_space<vmem>>, vector<8x256xf32>
    %c5 = arith.constant 5 : index
    %c0_37 = arith.constant 0 : index
    %c0_38 = arith.constant 0 : index
    %74 = vector.load %arg2[%c5, %c0_37, %c0_38] : memref<9x8x1xf32, #tpu.memory_space<vmem>>, vector<1x8x1xf32>
    %75 = vector.shape_cast %74 : vector<1x8x1xf32> to vector<8x1xf32>
    %76 = vector.broadcast %75 : vector<8x1xf32> to vector<8x256xf32>
    %77 = arith.mulf %73, %76 : vector<8x256xf32>
    %78 = arith.addf %72, %77 : vector<8x256xf32>
    %c0_39 = arith.constant 0 : index
    %c49 = arith.constant 49 : index
    %79 = vector.load %arg6[%c0_39, %c49] : memref<8x320xf32, #tpu.memory_space<vmem>>, vector<8x256xf32>
    %c8 = arith.constant 8 : index
    %c0_40 = arith.constant 0 : index
    %c0_41 = arith.constant 0 : index
    %80 = vector.load %arg2[%c8, %c0_40, %c0_41] : memref<9x8x1xf32, #tpu.memory_space<vmem>>, vector<1x8x1xf32>
    %81 = vector.shape_cast %80 : vector<1x8x1xf32> to vector<8x1xf32>
    %82 = vector.broadcast %81 : vector<8x1xf32> to vector<8x256xf32>
    %83 = arith.mulf %79, %82 : vector<8x256xf32>
    %84 = arith.addf %78, %83 : vector<8x256xf32>
    %c15_i32 = arith.constant 15 : i32
    %85 = vector.broadcast %c15_i32 : i32 to vector<8x256xi32>
    %86 = arith.cmpi slt, %20, %85 : vector<8x256xi32>
    %cst_42 = arith.constant 0.000000e+00 : f32
    %87 = vector.broadcast %cst_42 : f32 to vector<8x256xf32>
    %88 = arith.select %86, %84, %87 : vector<8x256xi1>, vector<8x256xf32>
    %89 = arith.addf %65, %88 : vector<8x256xf32>
    %cst_43 = arith.constant dense<0.000000e+00> : vector<8xf32>
    %90 = vector.multi_reduction <add>, %89, %cst_43 [1] : vector<8x256xf32> to vector<8xf32>
    %91 = vector.shape_cast %90 : vector<8xf32> to vector<8x1xf32>
    %c4_i32 = arith.constant 4 : i32
    %92 = tpu.dynamic_rotate %91 by %c4_i32 dim 0 : vector<8x1xf32>, i32 -> vector<8x1xf32>
    %93 = arith.addf %91, %92 : vector<8x1xf32>
    %cst_44 = arith.constant 0.001953125 : f32
    %94 = vector.broadcast %cst_44 : f32 to vector<8x1xf32>
    %95 = arith.mulf %93, %94 : vector<8x1xf32>
    %96 = vector.broadcast %95 : vector<8x1xf32> to vector<8x256xf32>
    %97 = arith.subf %89, %96 : vector<8x256xf32>
    %98 = arith.mulf %97, %97 : vector<8x256xf32>
    %cst_45 = arith.constant dense<0.000000e+00> : vector<8xf32>
    %99 = vector.multi_reduction <add>, %98, %cst_45 [1] : vector<8x256xf32> to vector<8xf32>
    %100 = vector.shape_cast %99 : vector<8xf32> to vector<8x1xf32>
    %c4_i32_46 = arith.constant 4 : i32
    %101 = tpu.dynamic_rotate %100 by %c4_i32_46 dim 0 : vector<8x1xf32>, i32 -> vector<8x1xf32>
    %102 = arith.addf %100, %101 : vector<8x1xf32>
    %cst_47 = arith.constant 0.001953125 : f32
    %103 = vector.broadcast %cst_47 : f32 to vector<8x1xf32>
    %104 = arith.mulf %102, %103 : vector<8x1xf32>
    %cst_48 = arith.constant 9.99999974E-6 : f32
    %105 = vector.broadcast %cst_48 : f32 to vector<8x1xf32>
    %106 = arith.addf %104, %105 : vector<8x1xf32>
    %107 = math.rsqrt %106 : vector<8x1xf32>
    %c0_49 = arith.constant 0 : index
    %c0_50 = arith.constant 0 : index
    %108 = vector.load %arg3[%c0_49, %c0_50] : memref<8x1xf32, #tpu.memory_space<vmem>>, vector<8x1xf32>
    %109 = arith.mulf %107, %108 : vector<8x1xf32>
    %110 = vector.broadcast %109 : vector<8x1xf32> to vector<8x256xf32>
    %111 = arith.mulf %97, %110 : vector<8x256xf32>
    %c0_51 = arith.constant 0 : index
    %c0_52 = arith.constant 0 : index
    %112 = vector.load %arg4[%c0_51, %c0_52] : memref<8x1xf32, #tpu.memory_space<vmem>>, vector<8x1xf32>
    %113 = vector.broadcast %112 : vector<8x1xf32> to vector<8x256xf32>
    %114 = arith.addf %111, %113 : vector<8x256xf32>
    %c0_53 = arith.constant 0 : index
    %c0_54 = arith.constant 0 : index
    %115 = vector.load %arg5[%c0_53, %c0_54] : memref<8x256xf32, #tpu.memory_space<vmem>>, vector<8x256xf32>
    tpu.vector_store %arg5[%c0_53, %c0_54], %114 {strides = array<i32>} : memref<8x256xf32, #tpu.memory_space<vmem>>, vector<8x256xf32>,
    return
  }
  func.func @transform_0(%arg0: i32) -> (i32, i32) {
    %c0_i32 = arith.constant 0 : i32
    %c0_i32_0 = arith.constant 0 : i32
    %c0_i32_1 = arith.constant 0 : i32
    return %c0_i32, %c0_i32_0 : i32, i32
  }
  func.func @transform_1(%arg0: i32) -> (i32, i32, i32) {
    %c0_i32 = arith.constant 0 : i32
    %c0_i32_0 = arith.constant 0 : i32
    %c0_i32_1 = arith.constant 0 : i32
    %c0_i32_2 = arith.constant 0 : i32
    return %c0_i32, %c0_i32_0, %c0_i32_1 : i32, i32, i32
  }
  func.func @transform_2(%arg0: i32) -> (i32, i32) {
    %c0_i32 = arith.constant 0 : i32
    %c0_i32_0 = arith.constant 0 : i32
    %c0_i32_1 = arith.constant 0 : i32
    return %c0_i32, %c0_i32_0 : i32, i32
  }
  func.func @transform_3(%arg0: i32) -> (i32, i32) {
    %c0_i32 = arith.constant 0 : i32
    %c0_i32_0 = arith.constant 0 : i32
    %c0_i32_1 = arith.constant 0 : i32
    return %c0_i32, %c0_i32_0 : i32, i32
  }
  func.func @transform_4(%arg0: i32) -> (i32, i32) {
    %c0_i32 = arith.constant 0 : i32
    %c0_i32_0 = arith.constant 0 : i32
    %c0_i32_1 = arith.constant 0 : i32
    return %c0_i32, %c0_i32_0 : i32, i32
  }
}

</mosaic_0001>

<llo_original>
// kernel: tpu_custom_call.1
$region0: #{tpu_custom_call.1}
  #allocation0 [shape = 'u32[]', space=smem, size = 0x4, offset = 0x4, fixed_abs, tag = 'smem constant byte address 0x4 - core index']
  #allocation1 [shape = 'u32[144,128]{1,0:T(1,128)}', space=vmem, size = 0x12000, scoped, tag = 'internal scratch']
  #allocation2 [shape = 'f32[8,320]{1,0:T(8,128)}', space=vmem, size = 0x3000, scoped, tag = 'scratch operand']
  %s0 = inlined_call_operand.vmem [shape: f32[8,256], index: 0, kind: input, shape index: {}]
  %s1 = inlined_call_operand.vmem [shape: f32[9,8,1], index: 1, kind: input, shape index: {}]
  %s2 = inlined_call_operand.vmem [shape: f32[8,1], index: 2, kind: input, shape index: {}]
  %s3 = inlined_call_operand.vmem [shape: f32[8,1], index: 3, kind: input, shape index: {}]
  %s4 = inlined_call_operand.hbm [shape: f32[8,256], index: 4, kind: output, shape index: {}]
  %s5 = sld [smem:[#allocation0]]
  $region26: #{tpu_custom_call.1} parent=0
    _
  %s7 = ssub.s32 1, %s5
  %s8 = scalar_select 0, %s7, %s5
  $region1: #{tpu_custom_call.1} parent=0
    #allocation3 [shape = 'u8[8192]{0}', space=vmem, size = 0x2000, scoped, tag = 'output window, operand 0, single buffered']
    #allocation4 [shape = 's32[1]{0}', space=sflag, size = 0x4, scoped, tag = 'scoped memory for tpu_custom_call.1']
    %9 = vsyncpa [#allocation4], 0
    // Predicated region
    $region2: #{tpu_custom_call.1} parent=1 // pred_check
      _
    $region3: #{tpu_custom_call.1} parent=1 // pred_check_branch
      %11 = sbr.rel (0) target = $region5
    $region4: #{tpu_custom_call.1} parent=1 // pred_region
      _
    $region5: #{tpu_custom_call.1} parent=1 // pred_fallthru
      _
    // Predicated region
    $region6: #{tpu_custom_call.1} parent=1 // pred_check
      _
    $region7: #{tpu_custom_call.1} parent=1 // pred_check_branch
      %13 = sbr.rel (0) target = $region9
    $region8: #{tpu_custom_call.1} parent=1 // pred_region
      _
    $region9: #{tpu_custom_call.1} parent=1 // pred_fallthru
      _
    // Predicated region
    $region10: #{tpu_custom_call.1} parent=1 // pred_check
      _
    $region11: #{tpu_custom_call.1} parent=1 // pred_check_branch
      %15 = sbr.rel (0) target = $region13
    $region12: #{tpu_custom_call.1} parent=1 // pred_region
      _
    $region13: #{tpu_custom_call.1} parent=1 // pred_fallthru
      _
    // Predicated region
    $region14: #{tpu_custom_call.1} parent=1 // pred_check
      _
    $region15: #{tpu_custom_call.1} parent=1 // pred_check_branch
      %17 = sbr.rel (0) target = $region17
    $region16: #{tpu_custom_call.1} parent=1 // pred_region
      _
    $region17: #{tpu_custom_call.1} parent=1 // pred_fallthru
      _
    %18 = vst [vmem:[#allocation2] sm:$0xff] 0.0
    %19 = vst [vmem:[#allocation2 + $0x8] sm:$0xff] 0.0
    %vm20 = vcmask 523264
    %21 = vst.msk [vmem:[#allocation2 + $0x10] sm:$0xff] %vm20, 0.0
    %v22 = vld [vmem:[%s0] sm:$0xff]
    %v23 = vld [vmem:[%s0 + $0x8] sm:$0xff]
    %26 = vrot.lane.b32.xlu0 %v22, 32
    %v27 = vpop.permute.xlu0 %26
    %28 = vrot.lane.b32.xlu0 %v23, 32
    %v29 = vpop.permute.xlu0 %28
    %vm30 = vcmask 261120
    %v31 = vsel %vm30, %v27, %v29
    %vm35 = vcmask 1047808
    %36 = vst.msk [vmem:[#allocation2] sm:$0xff] %vm35, %v27
    %37 = vst [vmem:[#allocation2 + $0x8] sm:$0xff] %v31
    %38 = vst.msk [vmem:[#allocation2 + $0x10] sm:$0xff] %vm30, %v29
    %v39 = vlaneseq
    %v40 = vand.u32 %v39, 127
    %v41 = vadd.s32 %v40, 128
    %vm42 = vcmp.lt.s32.totalorder %v40, 0
    %v43 = vsub.s32 0, %v40
    %v44 = vsel %vm42, %v43, %v40
    %v45 = vshrl.u32 %v44, 4
    %v46 = vand.u32 %v44, 15
    %v47 = vsub.s32 0, %v46
    %v48 = vsel %vm42, %v47, %v46
    %vm49 = vcmp.lt.s32.totalorder %v41, 0
    %v50 = vsub.s32 0, %v41
    %v51 = vsel %vm49, %v50, %v41
    %v52 = vshrl.u32 %v51, 4
    %v53 = vand.u32 %v51, 15
    %v54 = vsub.s32 0, %v53
    %v55 = vsel %vm49, %v54, %v53
    %vm56 = vcmp.ne.s32.totalorder %v48, 0
    %vm57 = vcmp.ne.s32.totalorder %v55, 0
    %vm58 = vcmp.lt.s32.totalorder %v48, 0
    %vm59 = vcmp.lt.s32.totalorder %v55, 0
    %vm60 = vmand %vm58, %vm56
    %vm61 = vmand %vm59, %vm57
    %v62 = vadd.s32 %v48, 16
    %v63 = vadd.s32 %v55, 16
    %v64 = vsel %vm60, %v62, %v48
    %v65 = vsel %vm61, %v63, %v55
    %v66 = vld [vmem:[#allocation2] sm:$0xff]
    %v67 = vld [vmem:[#allocation2 + $0x8] sm:$0xff]
    %v68 = vld [vmem:[#allocation2 + $0x10] sm:$0xff]
    %v69 = vld [vmem:[%s1] sm:$0xff]
    %71 = vset.pattern.permute.xlu0 0
    %72 = vperm.xlu0 %71, %v69
    %v73 = vpop.permute.xlu0 %72
    %v75 = vmul.f32 %v66, %v73
    %v76 = vmul.f32 %v67, %v73
    %v77 = vmul.f32 %v68, %v73
    %v78 = vadd.f32 %v75, 0.0
    %v79 = vadd.f32 %v76, 0.0
    %v80 = vadd.f32 %v77, 0.0
    %s81 = scalar_lea.vmem %s1, 24
    %v82 = vld [vmem:[%s81] sm:$0xff]
    %84 = vset.pattern.permute.xlu0 0
    %85 = vperm.xlu0 %84, %v82
    %v86 = vpop.permute.xlu0 %85
    %v88 = vmul.f32 %v66, %v86
    %v89 = vmul.f32 %v67, %v86
    %v90 = vmul.f32 %v68, %v86
    %94 = vrot.lane.b32.xlu0 %v88, 112
    %v95 = vpop.permute.xlu0 %94
    %96 = vrot.lane.b32.xlu0 %v89, 112
    %v97 = vpop.permute.xlu0 %96
    %98 = vrot.lane.b32.xlu0 %v90, 112
    %v99 = vpop.permute.xlu0 %98
    %vm100 = vcmask 916480
    %v101 = vsel %vm100, %v95, %v97
    %v102 = vsel %vm100, %v97, %v99
    %v106 = vadd.f32 %v78, %v101
    %v107 = vadd.f32 %v79, %v102
    %v108 = vadd.f32 %v80, %v99
    %s109 = scalar_lea.vmem %s1, 48
    %v110 = vld [vmem:[%s109] sm:$0xff]
    %112 = vset.pattern.permute.xlu0 0
    %113 = vperm.xlu0 %112, %v110
    %v114 = vpop.permute.xlu0 %113
    %v116 = vmul.f32 %v66, %v114
    %v117 = vmul.f32 %v67, %v114
    %v118 = vmul.f32 %v68, %v114
    %122 = vrot.lane.b32.xlu0 %v116, 96
    %v123 = vpop.permute.xlu0 %122
    %124 = vrot.lane.b32.xlu0 %v117, 96
    %v125 = vpop.permute.xlu0 %124
    %126 = vrot.lane.b32.xlu0 %v118, 96
    %v127 = vpop.permute.xlu0 %126
    %vm128 = vcmask 785408
    %v129 = vsel %vm128, %v123, %v125
    %v130 = vsel %vm128, %v125, %v127
    %v134 = vadd.f32 %v106, %v129
    %v135 = vadd.f32 %v107, %v130
    %v136 = vadd.f32 %v108, %v127
    %vm137 = vcmp.ge.s32.totalorder %v64, 1
    %vm138 = vcmp.ge.s32.totalorder %v65, 1
    %142 = vrot.lane.b32.xlu0 %v134, 113
    %v143 = vpop.permute.xlu0 %142
    %144 = vrot.lane.b32.xlu0 %v135, 113
    %v145 = vpop.permute.xlu0 %144
    %146 = vrot.lane.b32.xlu0 %v136, 113
    %v147 = vpop.permute.xlu0 %146
    %vm148 = vcmask 924672
    %v149 = vsel %vm148, %v143, %v145
    %v150 = vsel %vm148, %v145, %v147
    %v153 = vsel %vm137, %v149, 0.0
    %v154 = vsel %vm138, %v150, 0.0
    %v155 = vadd.f32 %v153, 0.0
    %v156 = vadd.f32 %v154, 0.0
    %s157 = scalar_lea.vmem %s1, 8
    %v158 = vld [vmem:[%s157] sm:$0xff]
    %160 = vset.pattern.permute.xlu0 0
    %161 = vperm.xlu0 %160, %v158
    %v162 = vpop.permute.xlu0 %161
    %v164 = vmul.f32 %v66, %v162
    %v165 = vmul.f32 %v67, %v162
    %v166 = vmul.f32 %v68, %v162
    %v167 = vadd.f32 %v164, 0.0
    %v168 = vadd.f32 %v165, 0.0
    %v169 = vadd.f32 %v166, 0.0
    %s170 = scalar_lea.vmem %s1, 32
    %v171 = vld [vmem:[%s170] sm:$0xff]
    %173 = vset.pattern.permute.xlu0 0
    %174 = vperm.xlu0 %173, %v171
    %v175 = vpop.permute.xlu0 %174
    %v177 = vmul.f32 %v66, %v175
    %v178 = vmul.f32 %v67, %v175
    %v179 = vmul.f32 %v68, %v175
    %183 = vrot.lane.b32.xlu0 %v177, 112
    %v184 = vpop.permute.xlu0 %183
    %185 = vrot.lane.b32.xlu0 %v178, 112
    %v186 = vpop.permute.xlu0 %185
    %187 = vrot.lane.b32.xlu0 %v179, 112
    %v188 = vpop.permute.xlu0 %187
    %v189 = vsel %vm100, %v184, %v186
    %v190 = vsel %vm100, %v186, %v188
    %v194 = vadd.f32 %v167, %v189
    %v195 = vadd.f32 %v168, %v190
    %v196 = vadd.f32 %v169, %v188
    %s197 = scalar_lea.vmem %s1, 56
    %v198 = vld [vmem:[%s197] sm:$0xff]
    %200 = vset.pattern.permute.xlu0 0
    %201 = vperm.xlu0 %200, %v198
    %v202 = vpop.permute.xlu0 %201
    %v204 = vmul.f32 %v66, %v202
    %v205 = vmul.f32 %v67, %v202
    %v206 = vmul.f32 %v68, %v202
    %210 = vrot.lane.b32.xlu0 %v204, 96
    %v211 = vpop.permute.xlu0 %210
    %212 = vrot.lane.b32.xlu0 %v205, 96
    %v213 = vpop.permute.xlu0 %212
    %214 = vrot.lane.b32.xlu0 %v206, 96
    %v215 = vpop.permute.xlu0 %214
    %v216 = vsel %vm128, %v211, %v213
    %v217 = vsel %vm128, %v213, %v215
    %v221 = vadd.f32 %v194, %v216
    %v222 = vadd.f32 %v195, %v217
    %v223 = vadd.f32 %v196, %v215
    %227 = vrot.lane.b32.xlu0 %v221, 112
    %v228 = vpop.permute.xlu0 %227
    %229 = vrot.lane.b32.xlu0 %v222, 112
    %v230 = vpop.permute.xlu0 %229
    %231 = vrot.lane.b32.xlu0 %v223, 112
    %v232 = vpop.permute.xlu0 %231
    %v233 = vsel %vm100, %v228, %v230
    %v234 = vsel %vm100, %v230, %v232
    %v237 = vadd.f32 %v155, %v233
    %v238 = vadd.f32 %v156, %v234
    %s239 = scalar_lea.vmem %s1, 16
    %v240 = vld [vmem:[%s239] sm:$0xff]
    %242 = vset.pattern.permute.xlu0 0
    %243 = vperm.xlu0 %242, %v240
    %v244 = vpop.permute.xlu0 %243
    %v246 = vmul.f32 %v66, %v244
    %v247 = vmul.f32 %v67, %v244
    %v248 = vmul.f32 %v68, %v244
    %v249 = vadd.f32 %v246, 0.0
    %v250 = vadd.f32 %v247, 0.0
    %v251 = vadd.f32 %v248, 0.0
    %s252 = scalar_lea.vmem %s1, 40
    %v253 = vld [vmem:[%s252] sm:$0xff]
    %255 = vset.pattern.permute.xlu0 0
    %256 = vperm.xlu0 %255, %v253
    %v257 = vpop.permute.xlu0 %256
    %v259 = vmul.f32 %v66, %v257
    %v260 = vmul.f32 %v67, %v257
    %v261 = vmul.f32 %v68, %v257
    %265 = vrot.lane.b32.xlu0 %v259, 112
    %v266 = vpop.permute.xlu0 %265
    %267 = vrot.lane.b32.xlu0 %v260, 112
    %v268 = vpop.permute.xlu0 %267
    %269 = vrot.lane.b32.xlu0 %v261, 112
    %v270 = vpop.permute.xlu0 %269
    %v271 = vsel %vm100, %v266, %v268
    %v272 = vsel %vm100, %v268, %v270
    %v276 = vadd.f32 %v249, %v271
    %v277 = vadd.f32 %v250, %v272
    %v278 = vadd.f32 %v251, %v270
    %s279 = scalar_lea.vmem %s1, 64
    %v280 = vld [vmem:[%s279] sm:$0xff]
    %282 = vset.pattern.permute.xlu0 0
    %283 = vperm.xlu0 %282, %v280
    %v284 = vpop.permute.xlu0 %283
    %v286 = vmul.f32 %v66, %v284
    %v287 = vmul.f32 %v67, %v284
    %v288 = vmul.f32 %v68, %v284
    %292 = vrot.lane.b32.xlu0 %v286, 96
    %v293 = vpop.permute.xlu0 %292
    %294 = vrot.lane.b32.xlu0 %v287, 96
    %v295 = vpop.permute.xlu0 %294
    %296 = vrot.lane.b32.xlu0 %v288, 96
    %v297 = vpop.permute.xlu0 %296
    %v298 = vsel %vm128, %v293, %v295
    %v299 = vsel %vm128, %v295, %v297
    %v303 = vadd.f32 %v276, %v298
    %v304 = vadd.f32 %v277, %v299
    %v305 = vadd.f32 %v278, %v297
    %vm306 = vcmp.lt.s32.totalorder %v64, 15
    %vm307 = vcmp.lt.s32.totalorder %v65, 15
    %311 = vrot.lane.b32.xlu0 %v303, 111
    %v312 = vpop.permute.xlu0 %311
    %313 = vrot.lane.b32.xlu0 %v304, 111
    %v314 = vpop.permute.xlu0 %313
    %315 = vrot.lane.b32.xlu0 %v305, 111
    %v316 = vpop.permute.xlu0 %315
    %vm317 = vcmask 908288
    %v318 = vsel %vm317, %v312, %v314
    %v319 = vsel %vm317, %v314, %v316
    %v322 = vsel %vm306, %v318, 0.0
    %v323 = vsel %vm307, %v319, 0.0
    %v324 = vadd.f32 %v237, %v322
    %v325 = vadd.f32 %v238, %v323
    %v326 = vadd.f32 %v324, %v325
    %327 = vadd.xlane.f32.xlu0 %v326
    %v328 = vpop.xlane.xlu0 %327
    %v329 = vrot.slane %v328, 4
    %v330 = vadd.f32 %v328, %v329
    %v331 = vmul.f32 %v330, 0.001953125
    %333 = vset.pattern.permute.xlu0 0
    %334 = vperm.xlu0 %333, %v331
    %v335 = vpop.permute.xlu0 %334
    %v337 = vsub.f32 %v324, %v335
    %v338 = vsub.f32 %v325, %v335
    %v339 = vmul.f32 %v337, %v337
    %v340 = vmul.f32 %v338, %v338
    %v341 = vadd.f32 %v339, %v340
    %342 = vadd.xlane.f32.xlu0 %v341
    %v343 = vpop.xlane.xlu0 %342
    %v344 = vrot.slane %v343, 4
    %v345 = vadd.f32 %v343, %v344
    %v346 = vmul.f32 %v345, 0.001953125
    %v347 = vadd.f32 %v346, 1e-05
    %v348 = vrsqrt.pop %v347
    %v349 = vld [vmem:[%s2] sm:$0xff]
    %v350 = vmul.f32 %v348, %v349
    %352 = vset.pattern.permute.xlu0 0
    %353 = vperm.xlu0 %352, %v350
    %v354 = vpop.permute.xlu0 %353
    %v356 = vmul.f32 %v337, %v354
    %v357 = vmul.f32 %v338, %v354
    %v358 = vld [vmem:[%s3] sm:$0xff]
    %360 = vset.pattern.permute.xlu0 0
    %361 = vperm.xlu0 %360, %v358
    %v362 = vpop.permute.xlu0 %361
    %v364 = vadd.f32 %v356, %v362
    %v365 = vadd.f32 %v357, %v362
    %366 = vst [vmem:[#allocation3] sm:$0xff] %v364
    %367 = vst [vmem:[#allocation3 + $0x8] sm:$0xff] %v365
    // Predicated region
    $region18: #{tpu_custom_call.1} parent=1 // pred_check
      _
    $region19: #{tpu_custom_call.1} parent=1 // pred_check_branch
      %369 = sbr.rel (0) target = $region21
    $region20: #{tpu_custom_call.1} parent=1 // pred_region
      %s371 = ssub.s32 256, 256
      %372 = vsyncadd [#allocation4], %s371
      %s374 = sshll.u32 [#allocation3], 4
      %s375 = int_to_ptr.vmem [resolvable:$true] %s374
      %377 = dma.vmem_to_hbm [thread:$0]  %s375, 256, %s4, [#allocation4]
    $region21: #{tpu_custom_call.1} parent=1 // pred_fallthru
      _
    // Predicated region
    $region22: #{tpu_custom_call.1} parent=1 // pred_check
      _
    $region23: #{tpu_custom_call.1} parent=1 // pred_check_branch
      %379 = sbr.rel (0) target = $region25
    $region24: #{tpu_custom_call.1} parent=1 // pred_region
      %380 = dma.done [#allocation4], 256
    $region25: #{tpu_custom_call.1} parent=1 // pred_fallthru
      _
    %381 = vsyncpa [#allocation4], 1

</llo_original>
